<compile_context>
chip_gen: v5e
topology: v5e:2x2
jax: 0.10.0
libtpu: 0.0.40
codegen_flags: <defaults>
</compile_context>

<pallas_src>
import functools

import numpy as np
import jax
import jax.numpy as jnp
from jax.experimental import pallas as pl
from jax.experimental.pallas import tpu as pltpu

NEG_SLOPE = 0.01  # f.leaky_relu default


def _leaky(x):
    return jnp.where(x > 0, x, NEG_SLOPE * x)


def _align8(v):
    return -(-v // 8) * 8


# ---------------------------------------------------------------------------
# Single fused kernel: EGConv passes + leaky_relu + mean pool + MLP head.
# ---------------------------------------------------------------------------
def egc_fused_kernel(x_ref, ah_ref, pm_ref, pt_ref, ws_ref, sb_ref, o_ref, *,
                     passes, fin, mod_size, num_bases, fc_hidden, out_dim,
                     r_bc, r_bias, r_w1, r_pt, r_w2, r_w3, r_b3):
    E = num_bases * mod_size           # expanded mixing width (= 128 here)

    x = x_ref[...]                     # [N, fin]
    ah = ah_ref[...]                   # [N, N]  sym-normalized adjacency
    ws = ws_ref[...]                   # [passes*fin, 2E] folded projection weights
    sb = sb_ref[...]                   # [R, E]  packed biases + MLP weights

    # rmat[j, m] = 1 iff j % mod_size == m : reduces expanded lanes over bases.
    j_idx = jax.lax.broadcasted_iota(jnp.int32, (E, mod_size), 0)
    m_idx = jax.lax.broadcasted_iota(jnp.int32, (E, mod_size), 1)
    rmat = (j_idx % mod_size == m_idx).astype(jnp.float32)

    xs = [x]
    cur = x
    for i in range(passes):
        wcomb = ws[i * fin:(i + 1) * fin, :]                  # [fin, 2E]
        bc_exp = sb[r_bc + i:r_bc + i + 1, :]                 # [1, E]
        bias = sb[r_bias + i:r_bias + i + 1, 0:mod_size]      # [1, mod_size]
        # One fused projection per pass; selector matmuls already folded in.
        proj = jnp.dot(cur, wcomb, preferred_element_type=jnp.float32)   # [N, 2E]
        wexp = proj[:, 0:E] + bc_exp                                     # weightings
        aexp = jnp.dot(ah, proj[:, E:2 * E],
                       preferred_element_type=jnp.float32)               # aggregated bases
        mixed = jnp.dot(wexp * aexp, rmat,
                        preferred_element_type=jnp.float32) + bias       # [N, mod_size]
        cur = _leaky(mixed)
        xs.append(cur)

    # JumpingKnowledge('cat') + problemType concat folded into chunk-split fc1:
    # mean-pooled chunks feed fc1 directly, no concatenation materialized.
    pm = pm_ref[...]                   # [G, N]
    pt = pt_ref[...]                   # [G, 1]
    w1pt = sb[r_pt:r_pt + 1, 0:fc_hidden]
    b1 = sb[r_pt + 1:r_pt + 2, 0:fc_hidden]
    b2 = sb[r_pt + 2:r_pt + 3, 0:fc_hidden]
    h = pt * w1pt + b1
    for jc in range(passes + 1):
        w1c = sb[r_w1 + jc * mod_size:r_w1 + (jc + 1) * mod_size, 0:fc_hidden]
        pooled = jnp.dot(pm, xs[jc], preferred_element_type=jnp.float32)  # [G, mod_size]
        h = h + jnp.dot(pooled, w1c, preferred_element_type=jnp.float32)
    h = _leaky(h)
    w2 = sb[r_w2:r_w2 + fc_hidden, 0:fc_hidden]
    h = _leaky(jnp.dot(h, w2, preferred_element_type=jnp.float32) + b2)
    w3 = sb[r_w3:r_w3 + fc_hidden, 0:out_dim]
    b3 = sb[r_b3:r_b3 + 1, 0:out_dim]
    o_ref[...] = jnp.dot(h, w3, preferred_element_type=jnp.float32) + b3


# ---------------------------------------------------------------------------
# One-time host-side folding / packing of all constant parameters.
# ---------------------------------------------------------------------------
def prepare_params(params, *, passes, num_heads, num_bases):
    H, B = num_heads, num_bases
    egc_np = [[np.asarray(t, np.float32) for t in p] for p in params["egc"]]
    mlp_np = [np.asarray(t, np.float32) for t in params["mlp"]]
    mod_size = egc_np[0][3].shape[-1]
    ch = mod_size // H
    E = B * mod_size
    fin = egc_np[0][0].shape[0]
    assert fin == mod_size, "packed layout assumes inputLayerSize % num_heads == 0"
    for p in egc_np[1:]:
        assert p[0].shape[0] == mod_size

    # Expanded lane index j = b*(H*ch) + h*ch + c.
    j = np.arange(E)
    b_i = j // mod_size
    m_i = j % mod_size
    h_i = m_i // ch
    c_i = m_i % ch
    w_cols = h_i * B + b_i             # weighting column feeding expanded lane j
    a_cols = b_i * ch + c_i            # basis column feeding expanded lane j

    w1, b1, w2, b2, w3, b3 = mlp_np
    fc_hidden = w1.shape[-1]
    out_dim = w3.shape[-1]
    jump_dim = (passes + 1) * mod_size
    assert w1.shape[0] == jump_dim + 1
    assert fc_hidden <= E and out_dim <= E and mod_size <= E

    # Slab A: folded per-pass projection weights  [wc_exp | wb_exp].
    wslab = np.zeros((passes * fin, 2 * E), np.float32)

    # Slab B: packed biases + MLP weights (E lanes wide, 8-aligned sections).
    r_bc = 0
    r_bias = _align8(r_bc + passes)
    r_w1 = _align8(r_bias + passes)
    r_pt = _align8(r_w1 + jump_dim)
    r_w2 = _align8(r_pt + 3)
    r_w3 = _align8(r_w2 + fc_hidden)
    r_b3 = _align8(r_w3 + fc_hidden)
    n_rows = _align8(r_b3 + 1)
    pslab = np.zeros((n_rows, E), np.float32)

    for i in range(passes):
        wb, wc, bc, bias = egc_np[i]
        wslab[i * fin:(i + 1) * fin, 0:E] = wc[:, w_cols]        # == wc @ swcat
        wslab[i * fin:(i + 1) * fin, E:2 * E] = wb[:, a_cols]    # == wb @ asel
        pslab[r_bc + i, 0:E] = bc[0, w_cols]                     # == bc @ swcat
        pslab[r_bias + i, 0:mod_size] = bias[0, :]
    pslab[r_w1:r_w1 + jump_dim, 0:fc_hidden] = w1[:jump_dim]     # chunk-split fc1
    pslab[r_pt, 0:fc_hidden] = w1[jump_dim]                      # problemType row
    pslab[r_pt + 1, 0:fc_hidden] = b1[0]
    pslab[r_pt + 2, 0:fc_hidden] = b2[0]
    pslab[r_w2:r_w2 + fc_hidden, 0:fc_hidden] = w2
    pslab[r_w3:r_w3 + fc_hidden, 0:out_dim] = w3
    pslab[r_b3, 0:out_dim] = b3[0]

    dims = dict(passes=passes, fin=fin, mod_size=mod_size, num_bases=B,
                fc_hidden=fc_hidden, out_dim=out_dim,
                r_bc=r_bc, r_bias=r_bias, r_w1=r_w1, r_pt=r_pt,
                r_w2=r_w2, r_w3=r_w3, r_b3=r_b3)
    return dict(wslab=jnp.asarray(wslab), pslab=jnp.asarray(pslab), dims=dims)


def make_egc_forward(packed):
    dims = packed["dims"]
    kernel = functools.partial(egc_fused_kernel, **dims)
    wslab, pslab = packed["wslab"], packed["pslab"]
    passes, fin = dims["passes"], dims["fin"]
    mod_size, fc_hidden, out_dim = dims["mod_size"], dims["fc_hidden"], dims["out_dim"]
    E = dims["num_bases"] * mod_size

    @jax.jit
    def fwd(x, a_hat, pool_mat, problem_type):
        n = x.shape[0]
        g = pool_mat.shape[0]
        pt = problem_type.reshape(-1, 1).astype(jnp.float32)

        flops = 0
        for _ in range(passes):
            flops += 2 * n * fin * 2 * E              # fused projection
            flops += 2 * n * n * E                    # symnorm aggregation
            flops += 2 * n * E * mod_size + n * E     # base mixing + elementwise
        flops += (passes + 1) * (2 * g * n * mod_size + 2 * g * mod_size * fc_hidden)
        flops += 2 * g * fc_hidden * fc_hidden + 2 * g * fc_hidden * out_dim
        in_bytes = 4 * (x.size + a_hat.size + pool_mat.size + pt.size
                        + wslab.size + pslab.size)
        bytes_accessed = in_bytes + 4 * g * out_dim
        vmem_limit = int(min(32 * 1024 * 1024, max(4 * 1024 * 1024, 6 * in_bytes)))

        vm = pl.BlockSpec(memory_space=pltpu.MemorySpace.VMEM)
        return pl.pallas_call(
            kernel,
            in_specs=[vm] * 6,
            out_specs=vm,
            out_shape=jax.ShapeDtypeStruct((g, out_dim), jnp.float32),
            compiler_params=pltpu.CompilerParams(vmem_limit_bytes=vmem_limit),
            cost_estimate=pl.CostEstimate(flops=flops, transcendentals=0,
                                          bytes_accessed=bytes_accessed),
        )(x, a_hat, pool_mat, pt, wslab, pslab)

    return fwd


# ---------------------------------------------------------------------------
# Pure-JAX reference (mirrors the PyTorch forward) for correctness check.
# ---------------------------------------------------------------------------
def egc_reference(x, a_hat, pool_mat, problem_type, params, *,
                  passes, num_heads, num_bases):
    xs = [x]
    cur = x
    for i in range(passes):
        wb, wc, bc, bias = params["egc"][i]
        n = cur.shape[0]
        ch = bias.shape[-1] // num_heads
        bases = cur @ wb
        weightings = cur @ wc + bc
        agg = a_hat @ bases
        mixed = jnp.einsum("nhb,nbc->nhc",
                           weightings.reshape(n, num_heads, num_bases),
                           agg.reshape(n, num_bases, ch)).reshape(n, -1) + bias
        cur = jnp.where(mixed > 0, mixed, NEG_SLOPE * mixed)
        xs.append(cur)
    x_cat = jnp.concatenate(xs, axis=1)                       # JumpingKnowledge('cat')
    pooled = pool_mat @ x_cat                                 # mean pool
    pooled = jnp.concatenate([pooled, problem_type.reshape(-1, 1)], axis=1)
    w1, b1, w2, b2, w3, b3 = params["mlp"]
    h = pooled @ w1 + b1
    h = jnp.where(h > 0, h, NEG_SLOPE * h)
    h = h @ w2 + b2
    h = jnp.where(h > 0, h, NEG_SLOPE * h)
    return h @ w3 + b3


if __name__ == "__main__":
    # ---- model config ----
    passes = 2
    input_size = 32
    output_size = 4
    num_heads, num_bases = 8, 4
    mod_size = input_size - input_size % num_heads            # 32
    ch = mod_size // num_heads                                 # 4
    jump_dim = passes * mod_size + input_size                  # 96
    fc_in = jump_dim + 1                                       # 97 (pool=['mean'])
    fc_hidden = fc_in // 2                                      # 48

    # ---- deterministic parameters ----
    key = jax.random.PRNGKey(0)
    ks = iter(jax.random.split(key, 32))
    params = {"egc": [], "mlp": None}
    for i in range(passes):
        fin = input_size if i == 0 else mod_size
        wb = 0.1 * jax.random.normal(next(ks), (fin, num_bases * ch), jnp.float32)
        wc = 0.1 * jax.random.normal(next(ks), (fin, num_heads * num_bases), jnp.float32)
        bc = 0.1 * jax.random.normal(next(ks), (1, num_heads * num_bases), jnp.float32)
        bias = 0.1 * jax.random.normal(next(ks), (1, mod_size), jnp.float32)
        params["egc"].append((wb, wc, bc, bias))
    w1 = 0.1 * jax.random.normal(next(ks), (fc_in, fc_hidden), jnp.float32)
    b1 = 0.1 * jax.random.normal(next(ks), (1, fc_hidden), jnp.float32)
    w2 = 0.1 * jax.random.normal(next(ks), (fc_hidden, fc_hidden), jnp.float32)
    b2 = 0.1 * jax.random.normal(next(ks), (1, fc_hidden), jnp.float32)
    w3 = 0.1 * jax.random.normal(next(ks), (fc_hidden, output_size), jnp.float32)
    b3 = 0.1 * jax.random.normal(next(ks), (1, output_size), jnp.float32)
    params["mlp"] = (w1, b1, w2, b2, w3, b3)

    # ---- example inputs: 2 graphs of 8 nodes each, ring topology ----
    n_nodes, n_graphs, per_graph = 16, 2, 8
    x = jax.random.normal(next(ks), (n_nodes, input_size), jnp.float32)
    batch = jnp.concatenate([jnp.full((per_graph,), g, jnp.int32)
                             for g in range(n_graphs)])
    problem_type = jnp.ones((n_graphs,), jnp.float32)

    src, dst = [], []
    for g in range(n_graphs):
        base = g * per_graph
        for i in range(per_graph):
            a, b = base + i, base + (i + 1) % per_graph
            src += [a, b]
            dst += [b, a]
    adj = jnp.zeros((n_nodes, n_nodes), jnp.float32)
    adj = adj.at[jnp.array(src), jnp.array(dst)].set(1.0)
    adj_sl = adj + jnp.eye(n_nodes, dtype=jnp.float32)         # add self loops
    deg = adj_sl.sum(axis=1)
    dinv = jnp.where(deg > 0, 1.0 / jnp.sqrt(deg), 0.0)        # guard isolated nodes
    a_hat = dinv[:, None] * adj_sl * dinv[None, :]             # symnorm weights

    onehot = (batch[None, :] == jnp.arange(n_graphs)[:, None]).astype(jnp.float32)
    pool_mat = onehot / jnp.maximum(onehot.sum(axis=1, keepdims=True), 1.0)  # mean pool

    # ---- one-time packing, then the jitted fused forward ----
    packed = prepare_params(params, passes=passes, num_heads=num_heads,
                            num_bases=num_bases)
    egc_fwd = make_egc_forward(packed)

    out = jax.block_until_ready(egc_fwd(x, a_hat, pool_mat, problem_type))
    assert out.shape == (n_graphs, output_size)

    ref = jax.block_until_ready(
        egc_reference(x, a_hat, pool_mat, problem_type, params,
                      passes=passes, num_heads=num_heads, num_bases=num_bases))
    assert float(jnp.max(jnp.abs(out - ref))) < 2e-4, "kernel/reference mismatch"
    print("KERNEL_OK")
</pallas_src>

<mosaic_0001>
module attributes {stable_mosaic.version = 11 : i64} {
  func.func @egc_fused_kernel(%arg0: memref<16x32xf32, #tpu.memory_space<vmem>>, %arg1: memref<16x16xf32, #tpu.memory_space<vmem>>, %arg2: memref<2x16xf32, #tpu.memory_space<vmem>>, %arg3: memref<2x1xf32, #tpu.memory_space<vmem>>, %arg4: memref<64x256xf32, #tpu.memory_space<vmem>>, %arg5: memref<224x128xf32, #tpu.memory_space<vmem>>, %arg6: memref<2x4xf32, #tpu.memory_space<vmem>>) attributes {dimension_semantics = [], scalar_prefetch = 0 : i64, scratch_operands = 0 : i64, tpu.core_type = #tpu.core_type<tc>} {
    %c0 = arith.constant 0 : index
    %c0_0 = arith.constant 0 : index
    %0 = vector.load %arg0[%c0, %c0_0] : memref<16x32xf32, #tpu.memory_space<vmem>>, vector<16x32xf32>
    %c0_1 = arith.constant 0 : index
    %c0_2 = arith.constant 0 : index
    %1 = vector.load %arg1[%c0_1, %c0_2] : memref<16x16xf32, #tpu.memory_space<vmem>>, vector<16x16xf32>
    %c0_3 = arith.constant 0 : index
    %c0_4 = arith.constant 0 : index
    %2 = vector.load %arg4[%c0_3, %c0_4] : memref<64x256xf32, #tpu.memory_space<vmem>>, vector<64x256xf32>
    %c0_5 = arith.constant 0 : index
    %c0_6 = arith.constant 0 : index
    %3 = vector.load %arg5[%c0_5, %c0_6] : memref<224x128xf32, #tpu.memory_space<vmem>>, vector<224x128xf32>
    %4 = tpu.iota {dimensions = array<i32: 0>} : vector<128x32xi32>
    %5 = tpu.iota {dimensions = array<i32: 1>} : vector<128x32xi32>
    %c32_i32 = arith.constant 32 : i32
    %c0_i32 = arith.constant 0 : i32
    %6 = arith.cmpi eq, %c32_i32, %c0_i32 : i32
    %c1_i32 = arith.constant 1 : i32
    %7 = arith.select %6, %c1_i32, %c32_i32 : i32
    %8 = vector.broadcast %7 : i32 to vector<128x32xi32>
    %9 = arith.remsi %4, %8 : vector<128x32xi32>
    %c0_i32_7 = arith.constant 0 : i32
    %10 = vector.broadcast %c0_i32_7 : i32 to vector<128x32xi32>
    %11 = arith.cmpi ne, %9, %10 : vector<128x32xi32>
    %c0_i32_8 = arith.constant 0 : i32
    %12 = vector.broadcast %c0_i32_8 : i32 to vector<128x32xi32>
    %13 = arith.cmpi slt, %9, %12 : vector<128x32xi32>
    %c0_i32_9 = arith.constant 0 : i32
    %14 = arith.cmpi slt, %7, %c0_i32_9 : i32
    %15 = vector.broadcast %14 : i1 to vector<128x32xi1>
    %16 = vector.broadcast %15 : vector<128x32xi1> to vector<128x32xi1>
    %17 = arith.xori %13, %16 : vector<128x32xi1>
    %18 = arith.andi %17, %11 : vector<128x32xi1>
    %19 = vector.broadcast %7 : i32 to vector<128x32xi32>
    %20 = arith.addi %9, %19 : vector<128x32xi32>
    %21 = arith.select %18, %20, %9 : vector<128x32xi1>, vector<128x32xi32>
    %22 = arith.cmpi eq, %21, %5 : vector<128x32xi32>
    %23 = arith.extui %22 : vector<128x32xi1> to vector<128x32xi32>
    %24 = arith.sitofp %23 : vector<128x32xi32> to vector<128x32xf32>
    %25 = vector.extract_strided_slice %2 {offsets = [0, 0], sizes = [32, 256], strides = [1, 1]} : vector<64x256xf32> to vector<32x256xf32>
    %26 = vector.extract_strided_slice %3 {offsets = [0, 0], sizes = [1, 128], strides = [1, 1]} : vector<224x128xf32> to vector<1x128xf32>
    %27 = vector.extract_strided_slice %3 {offsets = [8, 0], sizes = [1, 32], strides = [1, 1]} : vector<224x128xf32> to vector<1x32xf32>
    %cst = arith.constant dense<0.000000e+00> : vector<16x256xf32>
    %28 = tpu.matmul %0, %25, %cst {dimension_numbers = #tpu.dot_dimension_numbers<[1], [0], [0], [1], [0, 0, 1, 1], [], []>} : vector<16x32xf32>, vector<32x256xf32>, vector<16x256xf32> -> vector<16x256xf32>
    %29 = vector.extract_strided_slice %28 {offsets = [0, 0], sizes = [16, 128], strides = [1, 1]} : vector<16x256xf32> to vector<16x128xf32>
    %30 = vector.broadcast %26 : vector<1x128xf32> to vector<16x128xf32>
    %31 = arith.addf %29, %30 : vector<16x128xf32>
    %32 = vector.extract_strided_slice %28 {offsets = [0, 128], sizes = [16, 128], strides = [1, 1]} : vector<16x256xf32> to vector<16x128xf32>
    %cst_10 = arith.constant dense<0.000000e+00> : vector<16x128xf32>
    %33 = tpu.matmul %1, %32, %cst_10 {dimension_numbers = #tpu.dot_dimension_numbers<[1], [0], [0], [1], [0, 0, 1, 1], [], []>} : vector<16x16xf32>, vector<16x128xf32>, vector<16x128xf32> -> vector<16x128xf32>
    %34 = arith.mulf %31, %33 : vector<16x128xf32>
    %cst_11 = arith.constant dense<0.000000e+00> : vector<16x32xf32>
    %35 = tpu.matmul %34, %24, %cst_11 {dimension_numbers = #tpu.dot_dimension_numbers<[1], [0], [0], [1], [0, 0, 1, 1], [], []>} : vector<16x128xf32>, vector<128x32xf32>, vector<16x32xf32> -> vector<16x32xf32>
    %36 = vector.broadcast %27 : vector<1x32xf32> to vector<16x32xf32>
    %37 = arith.addf %35, %36 : vector<16x32xf32>
    %cst_12 = arith.constant 0.000000e+00 : f32
    %38 = vector.broadcast %cst_12 : f32 to vector<16x32xf32>
    %39 = arith.cmpf ogt, %37, %38 : vector<16x32xf32>
    %cst_13 = arith.constant 0.00999999977 : f32
    %40 = vector.broadcast %cst_13 : f32 to vector<16x32xf32>
    %41 = arith.mulf %40, %37 : vector<16x32xf32>
    %42 = arith.select %39, %37, %41 : vector<16x32xi1>, vector<16x32xf32>
    %43 = vector.extract_strided_slice %2 {offsets = [32, 0], sizes = [32, 256], strides = [1, 1]} : vector<64x256xf32> to vector<32x256xf32>
    %44 = vector.extract_strided_slice %3 {offsets = [1, 0], sizes = [1, 128], strides = [1, 1]} : vector<224x128xf32> to vector<1x128xf32>
    %45 = vector.extract_strided_slice %3 {offsets = [9, 0], sizes = [1, 32], strides = [1, 1]} : vector<224x128xf32> to vector<1x32xf32>
    %cst_14 = arith.constant dense<0.000000e+00> : vector<16x256xf32>
    %46 = tpu.matmul %42, %43, %cst_14 {dimension_numbers = #tpu.dot_dimension_numbers<[1], [0], [0], [1], [0, 0, 1, 1], [], []>} : vector<16x32xf32>, vector<32x256xf32>, vector<16x256xf32> -> vector<16x256xf32>
    %47 = vector.extract_strided_slice %46 {offsets = [0, 0], sizes = [16, 128], strides = [1, 1]} : vector<16x256xf32> to vector<16x128xf32>
    %48 = vector.broadcast %44 : vector<1x128xf32> to vector<16x128xf32>
    %49 = arith.addf %47, %48 : vector<16x128xf32>
    %50 = vector.extract_strided_slice %46 {offsets = [0, 128], sizes = [16, 128], strides = [1, 1]} : vector<16x256xf32> to vector<16x128xf32>
    %cst_15 = arith.constant dense<0.000000e+00> : vector<16x128xf32>
    %51 = tpu.matmul %1, %50, %cst_15 {dimension_numbers = #tpu.dot_dimension_numbers<[1], [0], [0], [1], [0, 0, 1, 1], [], []>} : vector<16x16xf32>, vector<16x128xf32>, vector<16x128xf32> -> vector<16x128xf32>
    %52 = arith.mulf %49, %51 : vector<16x128xf32>
    %cst_16 = arith.constant dense<0.000000e+00> : vector<16x32xf32>
    %53 = tpu.matmul %52, %24, %cst_16 {dimension_numbers = #tpu.dot_dimension_numbers<[1], [0], [0], [1], [0, 0, 1, 1], [], []>} : vector<16x128xf32>, vector<128x32xf32>, vector<16x32xf32> -> vector<16x32xf32>
    %54 = vector.broadcast %45 : vector<1x32xf32> to vector<16x32xf32>
    %55 = arith.addf %53, %54 : vector<16x32xf32>
    %cst_17 = arith.constant 0.000000e+00 : f32
    %56 = vector.broadcast %cst_17 : f32 to vector<16x32xf32>
    %57 = arith.cmpf ogt, %55, %56 : vector<16x32xf32>
    %cst_18 = arith.constant 0.00999999977 : f32
    %58 = vector.broadcast %cst_18 : f32 to vector<16x32xf32>
    %59 = arith.mulf %58, %55 : vector<16x32xf32>
    %60 = arith.select %57, %55, %59 : vector<16x32xi1>, vector<16x32xf32>
    %c0_19 = arith.constant 0 : index
    %c0_20 = arith.constant 0 : index
    %61 = vector.load %arg2[%c0_19, %c0_20] : memref<2x16xf32, #tpu.memory_space<vmem>>, vector<2x16xf32>
    %c0_21 = arith.constant 0 : index
    %c0_22 = arith.constant 0 : index
    %62 = vector.load %arg3[%c0_21, %c0_22] : memref<2x1xf32, #tpu.memory_space<vmem>>, vector<2x1xf32>
    %63 = vector.extract_strided_slice %3 {offsets = [112, 0], sizes = [1, 48], strides = [1, 1]} : vector<224x128xf32> to vector<1x48xf32>
    %64 = vector.extract_strided_slice %3 {offsets = [113, 0], sizes = [1, 48], strides = [1, 1]} : vector<224x128xf32> to vector<1x48xf32>
    %65 = vector.extract_strided_slice %3 {offsets = [114, 0], sizes = [1, 48], strides = [1, 1]} : vector<224x128xf32> to vector<1x48xf32>
    %66 = vector.broadcast %62 : vector<2x1xf32> to vector<2x48xf32>
    %67 = vector.broadcast %63 : vector<1x48xf32> to vector<2x48xf32>
    %68 = arith.mulf %66, %67 : vector<2x48xf32>
    %69 = vector.broadcast %64 : vector<1x48xf32> to vector<2x48xf32>
    %70 = arith.addf %68, %69 : vector<2x48xf32>
    %71 = vector.extract_strided_slice %3 {offsets = [16, 0], sizes = [32, 48], strides = [1, 1]} : vector<224x128xf32> to vector<32x48xf32>
    %cst_23 = arith.constant dense<0.000000e+00> : vector<2x32xf32>
    %72 = tpu.matmul %61, %0, %cst_23 {dimension_numbers = #tpu.dot_dimension_numbers<[1], [0], [0], [1], [0, 0, 1, 1], [], []>} : vector<2x16xf32>, vector<16x32xf32>, vector<2x32xf32> -> vector<2x32xf32>
    %cst_24 = arith.constant dense<0.000000e+00> : vector<2x48xf32>
    %73 = tpu.matmul %72, %71, %cst_24 {dimension_numbers = #tpu.dot_dimension_numbers<[1], [0], [0], [1], [0, 0, 1, 1], [], []>} : vector<2x32xf32>, vector<32x48xf32>, vector<2x48xf32> -> vector<2x48xf32>
    %74 = arith.addf %70, %73 : vector<2x48xf32>
    %75 = vector.extract_strided_slice %3 {offsets = [48, 0], sizes = [32, 48], strides = [1, 1]} : vector<224x128xf32> to vector<32x48xf32>
    %cst_25 = arith.constant dense<0.000000e+00> : vector<2x32xf32>
    %76 = tpu.matmul %61, %42, %cst_25 {dimension_numbers = #tpu.dot_dimension_numbers<[1], [0], [0], [1], [0, 0, 1, 1], [], []>} : vector<2x16xf32>, vector<16x32xf32>, vector<2x32xf32> -> vector<2x32xf32>
    %cst_26 = arith.constant dense<0.000000e+00> : vector<2x48xf32>
    %77 = tpu.matmul %76, %75, %cst_26 {dimension_numbers = #tpu.dot_dimension_numbers<[1], [0], [0], [1], [0, 0, 1, 1], [], []>} : vector<2x32xf32>, vector<32x48xf32>, vector<2x48xf32> -> vector<2x48xf32>
    %78 = arith.addf %74, %77 : vector<2x48xf32>
    %79 = vector.extract_strided_slice %3 {offsets = [80, 0], sizes = [32, 48], strides = [1, 1]} : vector<224x128xf32> to vector<32x48xf32>
    %cst_27 = arith.constant dense<0.000000e+00> : vector<2x32xf32>
    %80 = tpu.matmul %61, %60, %cst_27 {dimension_numbers = #tpu.dot_dimension_numbers<[1], [0], [0], [1], [0, 0, 1, 1], [], []>} : vector<2x16xf32>, vector<16x32xf32>, vector<2x32xf32> -> vector<2x32xf32>
    %cst_28 = arith.constant dense<0.000000e+00> : vector<2x48xf32>
    %81 = tpu.matmul %80, %79, %cst_28 {dimension_numbers = #tpu.dot_dimension_numbers<[1], [0], [0], [1], [0, 0, 1, 1], [], []>} : vector<2x32xf32>, vector<32x48xf32>, vector<2x48xf32> -> vector<2x48xf32>
    %82 = arith.addf %78, %81 : vector<2x48xf32>
    %cst_29 = arith.constant 0.000000e+00 : f32
    %83 = vector.broadcast %cst_29 : f32 to vector<2x48xf32>
    %84 = arith.cmpf ogt, %82, %83 : vector<2x48xf32>
    %cst_30 = arith.constant 0.00999999977 : f32
    %85 = vector.broadcast %cst_30 : f32 to vector<2x48xf32>
    %86 = arith.mulf %85, %82 : vector<2x48xf32>
    %87 = arith.select %84, %82, %86 : vector<2x48xi1>, vector<2x48xf32>
    %88 = vector.extract_strided_slice %3 {offsets = [120, 0], sizes = [48, 48], strides = [1, 1]} : vector<224x128xf32> to vector<48x48xf32>
    %cst_31 = arith.constant dense<0.000000e+00> : vector<2x48xf32>
    %89 = tpu.matmul %87, %88, %cst_31 {dimension_numbers = #tpu.dot_dimension_numbers<[1], [0], [0], [1], [0, 0, 1, 1], [], []>} : vector<2x48xf32>, vector<48x48xf32>, vector<2x48xf32> -> vector<2x48xf32>
    %90 = vector.broadcast %65 : vector<1x48xf32> to vector<2x48xf32>
    %91 = arith.addf %89, %90 : vector<2x48xf32>
    %cst_32 = arith.constant 0.000000e+00 : f32
    %92 = vector.broadcast %cst_32 : f32 to vector<2x48xf32>
    %93 = arith.cmpf ogt, %91, %92 : vector<2x48xf32>
    %cst_33 = arith.constant 0.00999999977 : f32
    %94 = vector.broadcast %cst_33 : f32 to vector<2x48xf32>
    %95 = arith.mulf %94, %91 : vector<2x48xf32>
    %96 = arith.select %93, %91, %95 : vector<2x48xi1>, vector<2x48xf32>
    %97 = vector.extract_strided_slice %3 {offsets = [168, 0], sizes = [48, 4], strides = [1, 1]} : vector<224x128xf32> to vector<48x4xf32>
    %98 = vector.extract_strided_slice %3 {offsets = [216, 0], sizes = [1, 4], strides = [1, 1]} : vector<224x128xf32> to vector<1x4xf32>
    %cst_34 = arith.constant dense<0.000000e+00> : vector<2x4xf32>
    %99 = tpu.matmul %96, %97, %cst_34 {dimension_numbers = #tpu.dot_dimension_numbers<[1], [0], [0], [1], [0, 0, 1, 1], [], []>} : vector<2x48xf32>, vector<48x4xf32>, vector<2x4xf32> -> vector<2x4xf32>
    %100 = vector.broadcast %98 : vector<1x4xf32> to vector<2x4xf32>
    %101 = arith.addf %99, %100 : vector<2x4xf32>
    %c0_35 = arith.constant 0 : index
    %c0_36 = arith.constant 0 : index
    %102 = vector.load %arg6[%c0_35, %c0_36] : memref<2x4xf32, #tpu.memory_space<vmem>>, vector<2x4xf32>
    tpu.vector_store %arg6[%c0_35, %c0_36], %101 {strides = array<i32>} : memref<2x4xf32, #tpu.memory_space<vmem>>, vector<2x4xf32>,
    return
  }
}

</mosaic_0001>

<llo_original>
// kernel: fwd.1
$region0: #{fwd.1}
  #allocation0 [shape = 'u32[]', space=smem, size = 0x4, offset = 0x4, fixed_abs, tag = 'smem constant byte address 0x4 - core index']
  #allocation1 [shape = 'u32[72,128]{1,0:T(1,128)}', space=vmem, size = 0x9000, scoped, tag = 'internal scratch']
  %s0 = inlined_call_operand.hbm [shape: f32[16,32], index: 0, kind: input, shape index: {}]
  %s1 = inlined_call_operand.hbm [shape: f32[16,16], index: 1, kind: input, shape index: {}]
  %s2 = inlined_call_operand.vmem [shape: f32[2,16], index: 2, kind: input, shape index: {}]
  %s3 = inlined_call_operand.vmem [shape: f32[2,1], index: 3, kind: input, shape index: {}]
  %s4 = inlined_call_operand.hbm [shape: f32[64,256], index: 4, kind: input, shape index: {}]
  %s5 = inlined_call_operand.hbm [shape: f32[224,128], index: 5, kind: input, shape index: {}]
  %s6 = inlined_call_operand.hbm [shape: f32[2,4], index: 6, kind: output, shape index: {}]
  %s7 = sld [smem:[#allocation0]]
  $region50: #{fwd.1} parent=0
    _
  %s9 = ssub.s32 1, %s7
  %s10 = scalar_select 0, %s9, %s7
  $region1: #{fwd.1} parent=0
    #allocation2 [shape = 'u8[8192]{0}', space=vmem, size = 0x2000, scoped, tag = 'input window, operand 0, single buffered']
    #allocation3 [shape = 's32[1]{0}', space=sflag, size = 0x4, scoped, tag = 'scoped memory for fwd.1']
    #allocation4 [shape = 's32[1]{0}', space=sflag, size = 0x4, scoped, tag = 'scoped memory for fwd.1']
    #allocation5 [shape = 'u8[8192]{0}', space=vmem, size = 0x2000, scoped, tag = 'input window, operand 1, single buffered']
    #allocation6 [shape = 's32[1]{0}', space=sflag, size = 0x4, scoped, tag = 'scoped memory for fwd.1']
    #allocation7 [shape = 'u8[65536]{0}', space=vmem, size = 0x10000, scoped, tag = 'input window, operand 4, single buffered']
    #allocation8 [shape = 'u8[114688]{0}', space=vmem, size = 0x1c000, scoped, tag = 'input window, operand 5, single buffered']
    #allocation9 [shape = 's32[1]{0}', space=sflag, size = 0x4, scoped, tag = 'scoped memory for fwd.1']
    #allocation10 [shape = 'u8[1024]{0}', space=vmem, size = 0x400, scoped, tag = 'output window, operand 0, single buffered']
    %11 = vsyncpa [#allocation3], 0
    %12 = vsyncpa [#allocation6], 0
    %13 = vsyncpa [#allocation9], 0
    %14 = vsyncpa [#allocation4], 0
    // Predicated region
    $region2: #{fwd.1} parent=1 // pred_check
      _
    $region3: #{fwd.1} parent=1 // pred_check_branch
      %16 = sbr.rel (0) target = $region5
    $region4: #{fwd.1} parent=1 // pred_region
      %18 = vsyncadd [#allocation3], 0
      %s19 = sshll.u32 %s0, 4
      %s20 = int_to_ptr.hbm [resolvable:$true] %s19
      %s21 = sshll.u32 [#allocation2], 4
      %s22 = int_to_ptr.vmem [resolvable:$true] %s21
      %27 = dma.hbm_to_vmem [thread:$0]  %s20, 256, %s22, [#allocation3], 128, 128, 8
    $region5: #{fwd.1} parent=1 // pred_fallthru
      _
    // Predicated region
    $region6: #{fwd.1} parent=1 // pred_check
      _
    $region7: #{fwd.1} parent=1 // pred_check_branch
      %29 = sbr.rel (0) target = $region9
    $region8: #{fwd.1} parent=1 // pred_region
      %31 = vsyncadd [#allocation6], 0
      %s32 = sshll.u32 %s1, 4
      %s33 = int_to_ptr.hbm [resolvable:$true] %s32
      %s34 = sshll.u32 [#allocation5], 4
      %s35 = int_to_ptr.vmem [resolvable:$true] %s34
      %40 = dma.hbm_to_vmem [thread:$0]  %s33, 256, %s35, [#allocation6], 128, 128, 8
    $region9: #{fwd.1} parent=1 // pred_fallthru
      _
    // Predicated region
    $region10: #{fwd.1} parent=1 // pred_check
      _
    $region11: #{fwd.1} parent=1 // pred_check_branch
      %42 = sbr.rel (0) target = $region13
    $region12: #{fwd.1} parent=1 // pred_region
      _
    $region13: #{fwd.1} parent=1 // pred_fallthru
      _
    // Predicated region
    $region14: #{fwd.1} parent=1 // pred_check
      _
    $region15: #{fwd.1} parent=1 // pred_check_branch
      %44 = sbr.rel (0) target = $region17
    $region16: #{fwd.1} parent=1 // pred_region
      _
    $region17: #{fwd.1} parent=1 // pred_fallthru
      _
    // Predicated region
    $region18: #{fwd.1} parent=1 // pred_check
      _
    $region19: #{fwd.1} parent=1 // pred_check_branch
      %46 = sbr.rel (0) target = $region21
    $region20: #{fwd.1} parent=1 // pred_region
      %48 = vsyncadd [#allocation6], 0
      %s49 = sshll.u32 %s4, 4
      %s50 = int_to_ptr.hbm [resolvable:$true] %s49
      %s51 = sshll.u32 [#allocation7], 4
      %s52 = int_to_ptr.vmem [resolvable:$true] %s51
      %57 = dma.hbm_to_vmem [thread:$0]  %s50, 2048, %s52, [#allocation6], 256, 256, 16
    $region21: #{fwd.1} parent=1 // pred_fallthru
      _
    // Predicated region
    $region22: #{fwd.1} parent=1 // pred_check
      _
    $region23: #{fwd.1} parent=1 // pred_check_branch
      %59 = sbr.rel (0) target = $region25
    $region24: #{fwd.1} parent=1 // pred_region
      %61 = vsyncadd [#allocation9], 0
      %s62 = sshll.u32 %s5, 4
      %s63 = int_to_ptr.hbm [resolvable:$true] %s62
      %s64 = sshll.u32 [#allocation8], 4
      %s65 = int_to_ptr.vmem [resolvable:$true] %s64
      %70 = dma.hbm_to_vmem [thread:$0]  %s63, 3584, %s65, [#allocation9], 128, 128, 8
    $region25: #{fwd.1} parent=1 // pred_fallthru
      _
    // Predicated region
    $region26: #{fwd.1} parent=1 // pred_check
      _
    $region27: #{fwd.1} parent=1 // pred_check_branch
      %72 = sbr.rel (0) target = $region29
    $region28: #{fwd.1} parent=1 // pred_region
      %74 = dma.done [#allocation3], 256
    $region29: #{fwd.1} parent=1 // pred_fallthru
      _
    // Predicated region
    $region30: #{fwd.1} parent=1 // pred_check
      _
    $region31: #{fwd.1} parent=1 // pred_check_branch
      %76 = sbr.rel (0) target = $region33
    $region32: #{fwd.1} parent=1 // pred_region
      %78 = dma.done [#allocation6], 256
    $region33: #{fwd.1} parent=1 // pred_fallthru
      _
    // Predicated region
    $region34: #{fwd.1} parent=1 // pred_check
      _
    $region35: #{fwd.1} parent=1 // pred_check_branch
      %80 = sbr.rel (0) target = $region37
    $region36: #{fwd.1} parent=1 // pred_region
      %82 = dma.done [#allocation6], 2048
    $region37: #{fwd.1} parent=1 // pred_fallthru
      _
    // Predicated region
    $region38: #{fwd.1} parent=1 // pred_check
      _
    $region39: #{fwd.1} parent=1 // pred_check_branch
      %84 = sbr.rel (0) target = $region41
    $region40: #{fwd.1} parent=1 // pred_region
      %86 = dma.done [#allocation9], 3584
    $region41: #{fwd.1} parent=1 // pred_fallthru
      _
    %v87 = vld [vmem:[#allocation2] sm:$0xff]
    %v88 = vld [vmem:[#allocation2 + $0x8] sm:$0xff]
    %v89 = vld [vmem:[#allocation5] sm:$0xff]
    %v90 = vld [vmem:[#allocation5 + $0x8] sm:$0xff]
    %v91 = vld [vmem:[#allocation7] sm:$0xff]
    %v92 = vld [vmem:[#allocation7 + $0x8] sm:$0xff]
    %v93 = vld [vmem:[#allocation7 + $0x10] sm:$0xff]
    %v94 = vld [vmem:[#allocation7 + $0x18] sm:$0xff]
    %v95 = vld [vmem:[#allocation7 + $0x20] sm:$0xff]
    %v96 = vld [vmem:[#allocation7 + $0x28] sm:$0xff]
    %v97 = vld [vmem:[#allocation7 + $0x30] sm:$0xff]
    %v98 = vld [vmem:[#allocation7 + $0x38] sm:$0xff]
    %v99 = vld [vmem:[#allocation7 + $0x40] sm:$0xff]
    %v100 = vld [vmem:[#allocation7 + $0x48] sm:$0xff]
    %v101 = vld [vmem:[#allocation7 + $0x50] sm:$0xff]
    %v102 = vld [vmem:[#allocation7 + $0x58] sm:$0xff]
    %v103 = vld [vmem:[#allocation7 + $0x60] sm:$0xff]
    %v104 = vld [vmem:[#allocation7 + $0x68] sm:$0xff]
    %v105 = vld [vmem:[#allocation7 + $0x70] sm:$0xff]
    %v106 = vld [vmem:[#allocation7 + $0x78] sm:$0xff]
    %v107 = vld [vmem:[#allocation8] sm:$0xff]
    %v108 = vld [vmem:[#allocation8 + $0x8] sm:$0xff]
    %v109 = vld [vmem:[#allocation8 + $0x10] sm:$0xff]
    %v110 = vld [vmem:[#allocation8 + $0x18] sm:$0xff]
    %v111 = vld [vmem:[#allocation8 + $0x20] sm:$0xff]
    %v112 = vld [vmem:[#allocation8 + $0x28] sm:$0xff]
    %v113 = vld [vmem:[#allocation8 + $0x30] sm:$0xff]
    %v114 = vld [vmem:[#allocation8 + $0x38] sm:$0xff]
    %v115 = vld [vmem:[#allocation8 + $0x40] sm:$0xff]
    %v116 = vld [vmem:[#allocation8 + $0x48] sm:$0xff]
    %v117 = vld [vmem:[#allocation8 + $0x50] sm:$0xff]
    %v118 = vld [vmem:[#allocation8 + $0x58] sm:$0xff]
    %v119 = vld [vmem:[#allocation8 + $0x60] sm:$0xff]
    %v120 = vld [vmem:[#allocation8 + $0x68] sm:$0xff]
    %v121 = vld [vmem:[#allocation8 + $0x70] sm:$0xff]
    %v122 = vld [vmem:[#allocation8 + $0x78] sm:$0xff]
    %v123 = vld [vmem:[#allocation8 + $0x80] sm:$0xff]
    %v124 = vld [vmem:[#allocation8 + $0x88] sm:$0xff]
    %v125 = vld [vmem:[#allocation8 + $0x90] sm:$0xff]
    %v126 = vld [vmem:[#allocation8 + $0x98] sm:$0xff]
    %v127 = vld [vmem:[#allocation8 + $0xa0] sm:$0xff]
    %v128 = vld [vmem:[#allocation8 + $0xa8] sm:$0xff]
    %v129 = vld [vmem:[#allocation8 + $0xb0] sm:$0xff]
    %v130 = vld [vmem:[#allocation8 + $0xb8] sm:$0xff]
    %v131 = vld [vmem:[#allocation8 + $0xc0] sm:$0xff]
    %v132 = vld [vmem:[#allocation8 + $0xc8] sm:$0xff]
    %v133 = vld [vmem:[#allocation8 + $0xd0] sm:$0xff]
    %v134 = vld [vmem:[#allocation8 + $0xd8] sm:$0xff]
    %v135 = vlaneseq
    %v136 = vshrl.u32 %v135, 7
    %v137 = vadd.s32 %v136, 8
    %v138 = vadd.s32 %v136, 16
    %v139 = vadd.s32 %v136, 24
    %v140 = vadd.s32 %v136, 32
    %v141 = vadd.s32 %v136, 40
    %v142 = vadd.s32 %v136, 48
    %v143 = vadd.s32 %v136, 56
    %v144 = vadd.s32 %v136, 64
    %v145 = vadd.s32 %v136, 72
    %v146 = vadd.s32 %v136, 80
    %v147 = vadd.s32 %v136, 88
    %v148 = vadd.s32 %v136, 96
    %v149 = vadd.s32 %v136, 104
    %v150 = vadd.s32 %v136, 112
    %v151 = vadd.s32 %v136, 120
    %v152 = vlaneseq
    %v153 = vand.u32 %v152, 127
    %vm154 = vcmp.lt.s32.totalorder %v136, 0
    %v155 = vsub.s32 0, %v136
    %v156 = vsel %vm154, %v155, %v136
    %v157 = vshrl.u32 %v156, 5
    %v158 = vand.u32 %v156, 31
    %v159 = vsub.s32 0, %v158
    %v160 = vsel %vm154, %v159, %v158
    %vm161 = vcmp.lt.s32.totalorder %v137, 0
    %v162 = vsub.s32 0, %v137
    %v163 = vsel %vm161, %v162, %v137
    %v164 = vshrl.u32 %v163, 5
    %v165 = vand.u32 %v163, 31
    %v166 = vsub.s32 0, %v165
    %v167 = vsel %vm161, %v166, %v165
    %vm168 = vcmp.lt.s32.totalorder %v138, 0
    %v169 = vsub.s32 0, %v138
    %v170 = vsel %vm168, %v169, %v138
    %v171 = vshrl.u32 %v170, 5
    %v172 = vand.u32 %v170, 31
    %v173 = vsub.s32 0, %v172
    %v174 = vsel %vm168, %v173, %v172
    %vm175 = vcmp.lt.s32.totalorder %v139, 0
    %v176 = vsub.s32 0, %v139
    %v177 = vsel %vm175, %v176, %v139
    %v178 = vshrl.u32 %v177, 5
    %v179 = vand.u32 %v177, 31
    %v180 = vsub.s32 0, %v179
    %v181 = vsel %vm175, %v180, %v179
    %vm182 = vcmp.lt.s32.totalorder %v140, 0
    %v183 = vsub.s32 0, %v140
    %v184 = vsel %vm182, %v183, %v140
    %v185 = vshrl.u32 %v184, 5
    %v186 = vand.u32 %v184, 31
    %v187 = vsub.s32 0, %v186
    %v188 = vsel %vm182, %v187, %v186
    %vm189 = vcmp.lt.s32.totalorder %v141, 0
    %v190 = vsub.s32 0, %v141
    %v191 = vsel %vm189, %v190, %v141
    %v192 = vshrl.u32 %v191, 5
    %v193 = vand.u32 %v191, 31
    %v194 = vsub.s32 0, %v193
    %v195 = vsel %vm189, %v194, %v193
    %vm196 = vcmp.lt.s32.totalorder %v142, 0
    %v197 = vsub.s32 0, %v142
    %v198 = vsel %vm196, %v197, %v142
    %v199 = vshrl.u32 %v198, 5
    %v200 = vand.u32 %v198, 31
    %v201 = vsub.s32 0, %v200
    %v202 = vsel %vm196, %v201, %v200
    %vm203 = vcmp.lt.s32.totalorder %v143, 0
    %v204 = vsub.s32 0, %v143
    %v205 = vsel %vm203, %v204, %v143
    %v206 = vshrl.u32 %v205, 5
    %v207 = vand.u32 %v205, 31
    %v208 = vsub.s32 0, %v207
    %v209 = vsel %vm203, %v208, %v207
    %vm210 = vcmp.lt.s32.totalorder %v144, 0
    %v211 = vsub.s32 0, %v144
    %v212 = vsel %vm210, %v211, %v144
    %v213 = vshrl.u32 %v212, 5
    %v214 = vand.u32 %v212, 31
    %v215 = vsub.s32 0, %v214
    %v216 = vsel %vm210, %v215, %v214
    %vm217 = vcmp.lt.s32.totalorder %v145, 0
    %v218 = vsub.s32 0, %v145
    %v219 = vsel %vm217, %v218, %v145
    %v220 = vshrl.u32 %v219, 5
    %v221 = vand.u32 %v219, 31
    %v222 = vsub.s32 0, %v221
    %v223 = vsel %vm217, %v222, %v221
    %vm224 = vcmp.lt.s32.totalorder %v146, 0
    %v225 = vsub.s32 0, %v146
    %v226 = vsel %vm224, %v225, %v146
    %v227 = vshrl.u32 %v226, 5
    %v228 = vand.u32 %v226, 31
    %v229 = vsub.s32 0, %v228
    %v230 = vsel %vm224, %v229, %v228
    %vm231 = vcmp.lt.s32.totalorder %v147, 0
    %v232 = vsub.s32 0, %v147
    %v233 = vsel %vm231, %v232, %v147
    %v234 = vshrl.u32 %v233, 5
    %v235 = vand.u32 %v233, 31
    %v236 = vsub.s32 0, %v235
    %v237 = vsel %vm231, %v236, %v235
    %vm238 = vcmp.lt.s32.totalorder %v148, 0
    %v239 = vsub.s32 0, %v148
    %v240 = vsel %vm238, %v239, %v148
    %v241 = vshrl.u32 %v240, 5
    %v242 = vand.u32 %v240, 31
    %v243 = vsub.s32 0, %v242
    %v244 = vsel %vm238, %v243, %v242
    %vm245 = vcmp.lt.s32.totalorder %v149, 0
    %v246 = vsub.s32 0, %v149
    %v247 = vsel %vm245, %v246, %v149
    %v248 = vshrl.u32 %v247, 5
    %v249 = vand.u32 %v247, 31
    %v250 = vsub.s32 0, %v249
    %v251 = vsel %vm245, %v250, %v249
    %vm252 = vcmp.lt.s32.totalorder %v150, 0
    %v253 = vsub.s32 0, %v150
    %v254 = vsel %vm252, %v253, %v150
    %v255 = vshrl.u32 %v254, 5
    %v256 = vand.u32 %v254, 31
    %v257 = vsub.s32 0, %v256
    %v258 = vsel %vm252, %v257, %v256
    %vm259 = vcmp.lt.s32.totalorder %v151, 0
    %v260 = vsub.s32 0, %v151
    %v261 = vsel %vm259, %v260, %v151
    %v262 = vshrl.u32 %v261, 5
    %v263 = vand.u32 %v261, 31
    %v264 = vsub.s32 0, %v263
    %v265 = vsel %vm259, %v264, %v263
    %vm266 = vcmp.ne.s32.totalorder %v160, 0
    %vm267 = vcmp.ne.s32.totalorder %v167, 0
    %vm268 = vcmp.ne.s32.totalorder %v174, 0
    %vm269 = vcmp.ne.s32.totalorder %v181, 0
    %vm270 = vcmp.ne.s32.totalorder %v188, 0
    %vm271 = vcmp.ne.s32.totalorder %v195, 0
    %vm272 = vcmp.ne.s32.totalorder %v202, 0
    %vm273 = vcmp.ne.s32.totalorder %v209, 0
    %vm274 = vcmp.ne.s32.totalorder %v216, 0
    %vm275 = vcmp.ne.s32.totalorder %v223, 0
    %vm276 = vcmp.ne.s32.totalorder %v230, 0
    %vm277 = vcmp.ne.s32.totalorder %v237, 0
    %vm278 = vcmp.ne.s32.totalorder %v244, 0
    %vm279 = vcmp.ne.s32.totalorder %v251, 0
    %vm280 = vcmp.ne.s32.totalorder %v258, 0
    %vm281 = vcmp.ne.s32.totalorder %v265, 0
    %vm282 = vcmp.lt.s32.totalorder %v160, 0
    %vm283 = vcmp.lt.s32.totalorder %v167, 0
    %vm284 = vcmp.lt.s32.totalorder %v174, 0
    %vm285 = vcmp.lt.s32.totalorder %v181, 0
    %vm286 = vcmp.lt.s32.totalorder %v188, 0
    %vm287 = vcmp.lt.s32.totalorder %v195, 0
    %vm288 = vcmp.lt.s32.totalorder %v202, 0
    %vm289 = vcmp.lt.s32.totalorder %v209, 0
    %vm290 = vcmp.lt.s32.totalorder %v216, 0
    %vm291 = vcmp.lt.s32.totalorder %v223, 0
    %vm292 = vcmp.lt.s32.totalorder %v230, 0
    %vm293 = vcmp.lt.s32.totalorder %v237, 0
    %vm294 = vcmp.lt.s32.totalorder %v244, 0
    %vm295 = vcmp.lt.s32.totalorder %v251, 0
    %vm296 = vcmp.lt.s32.totalorder %v258, 0
    %vm297 = vcmp.lt.s32.totalorder %v265, 0
    %vm298 = vmand %vm282, %vm266
    %vm299 = vmand %vm283, %vm267
    %vm300 = vmand %vm284, %vm268
    %vm301 = vmand %vm285, %vm269
    %vm302 = vmand %vm286, %vm270
    %vm303 = vmand %vm287, %vm271
    %vm304 = vmand %vm288, %vm272
    %vm305 = vmand %vm289, %vm273
    %vm306 = vmand %vm290, %vm274
    %vm307 = vmand %vm291, %vm275
    %vm308 = vmand %vm292, %vm276
    %vm309 = vmand %vm293, %vm277
    %vm310 = vmand %vm294, %vm278
    %vm311 = vmand %vm295, %vm279
    %vm312 = vmand %vm296, %vm280
    %vm313 = vmand %vm297, %vm281
    %v314 = vadd.s32 %v160, 32
    %v315 = vadd.s32 %v167, 32
    %v316 = vadd.s32 %v174, 32
    %v317 = vadd.s32 %v181, 32
    %v318 = vadd.s32 %v188, 32
    %v319 = vadd.s32 %v195, 32
    %v320 = vadd.s32 %v202, 32
    %v321 = vadd.s32 %v209, 32
    %v322 = vadd.s32 %v216, 32
    %v323 = vadd.s32 %v223, 32
    %v324 = vadd.s32 %v230, 32
    %v325 = vadd.s32 %v237, 32
    %v326 = vadd.s32 %v244, 32
    %v327 = vadd.s32 %v251, 32
    %v328 = vadd.s32 %v258, 32
    %v329 = vadd.s32 %v265, 32
    %v330 = vsel %vm298, %v314, %v160
    %v331 = vsel %vm299, %v315, %v167
    %v332 = vsel %vm300, %v316, %v174
    %v333 = vsel %vm301, %v317, %v181
    %v334 = vsel %vm302, %v318, %v188
    %v335 = vsel %vm303, %v319, %v195
    %v336 = vsel %vm304, %v320, %v202
    %v337 = vsel %vm305, %v321, %v209
    %v338 = vsel %vm306, %v322, %v216
    %v339 = vsel %vm307, %v323, %v223
    %v340 = vsel %vm308, %v324, %v230
    %v341 = vsel %vm309, %v325, %v237
    %v342 = vsel %vm310, %v326, %v244
    %v343 = vsel %vm311, %v327, %v251
    %v344 = vsel %vm312, %v328, %v258
    %v345 = vsel %vm313, %v329, %v265
    %vm346 = vcmp.eq.s32.totalorder %v330, %v153
    %vm347 = vcmp.eq.s32.totalorder %v331, %v153
    %vm348 = vcmp.eq.s32.totalorder %v332, %v153
    %vm349 = vcmp.eq.s32.totalorder %v333, %v153
    %vm350 = vcmp.eq.s32.totalorder %v334, %v153
    %vm351 = vcmp.eq.s32.totalorder %v335, %v153
    %vm352 = vcmp.eq.s32.totalorder %v336, %v153
    %vm353 = vcmp.eq.s32.totalorder %v337, %v153
    %vm354 = vcmp.eq.s32.totalorder %v338, %v153
    %vm355 = vcmp.eq.s32.totalorder %v339, %v153
    %vm356 = vcmp.eq.s32.totalorder %v340, %v153
    %vm357 = vcmp.eq.s32.totalorder %v341, %v153
    %vm358 = vcmp.eq.s32.totalorder %v342, %v153
    %vm359 = vcmp.eq.s32.totalorder %v343, %v153
    %vm360 = vcmp.eq.s32.totalorder %v344, %v153
    %vm361 = vcmp.eq.s32.totalorder %v345, %v153
    %v362 = vsel %vm346, 1, 0
    %v363 = vsel %vm347, 1, 0
    %v364 = vsel %vm348, 1, 0
    %v365 = vsel %vm349, 1, 0
    %v366 = vsel %vm350, 1, 0
    %v367 = vsel %vm351, 1, 0
    %v368 = vsel %vm352, 1, 0
    %v369 = vsel %vm353, 1, 0
    %v370 = vsel %vm354, 1, 0
    %v371 = vsel %vm355, 1, 0
    %v372 = vsel %vm356, 1, 0
    %v373 = vsel %vm357, 1, 0
    %v374 = vsel %vm358, 1, 0
    %v375 = vsel %vm359, 1, 0
    %v376 = vsel %vm360, 1, 0
    %v377 = vsel %vm361, 1, 0
    %v378 = vcvt.s32.f32 %v362
    %v379 = vcvt.s32.f32 %v363
    %v380 = vcvt.s32.f32 %v364
    %v381 = vcvt.s32.f32 %v365
    %v382 = vcvt.s32.f32 %v366
    %v383 = vcvt.s32.f32 %v367
    %v384 = vcvt.s32.f32 %v368
    %v385 = vcvt.s32.f32 %v369
    %v386 = vcvt.s32.f32 %v370
    %v387 = vcvt.s32.f32 %v371
    %v388 = vcvt.s32.f32 %v372
    %v389 = vcvt.s32.f32 %v373
    %v390 = vcvt.s32.f32 %v374
    %v391 = vcvt.s32.f32 %v375
    %v392 = vcvt.s32.f32 %v376
    %v393 = vcvt.s32.f32 %v377
    %vm394 = vcmask 261120
    %v396 = vsel %vm394, %v87, 0
    %v399 = vsel %vm394, %v88, 0
    %401 = vmatpush.msra.mxu0 0.0
    %402 = vmatpush.msra.mxu0 0.0
    %403 = vmatpush.msra.mxu0 0.0
    %404 = vmatpush.msra.mxu0 0.0
    %405 = vmatpush.msra.mxu0 0.0
    %406 = vmatpush.msra.mxu0 0.0
    %407 = vmatpush.msra.mxu0 0.0
    %408 = vmatpush.msra.mxu0 0.0
    %409 = vmatpush.msra.mxu0 0.0
    %410 = vmatpush.msra.mxu0 0.0
    %411 = vmatpush.msra.mxu0 0.0
    %412 = vmatpush.msra.mxu0 0.0
    %413 = vmatpush.msra.mxu0 %v97
    %414 = vmatpush.msra.mxu0 %v95
    %415 = vmatpush.msra.mxu0 %v93
    %416 = vmatpush.msra.mxu0 %v91
    %417 = vmatmul.f32.gmra.mxu0 %v396
    %v418 = vpop.f32.mrf.mxu0
    %v419 = vadd.f32 0.0, %v418
    %420 = vmatmul.f32.gmra.mxu0 %v399
    %v421 = vpop.f32.mrf.mxu0
    %v422 = vadd.f32 0.0, %v421
    %423 = vdwg.mxu0
    %424 = vmatpush.msra.mxu0 0.0
    %425 = vmatpush.msra.mxu0 0.0
    %426 = vmatpush.msra.mxu0 0.0
    %427 = vmatpush.msra.mxu0 0.0
    %428 = vmatpush.msra.mxu0 0.0
    %429 = vmatpush.msra.mxu0 0.0
    %430 = vmatpush.msra.mxu0 0.0
    %431 = vmatpush.msra.mxu0 0.0
    %432 = vmatpush.msra.mxu0 0.0
    %433 = vmatpush.msra.mxu0 0.0
    %434 = vmatpush.msra.mxu0 0.0
    %435 = vmatpush.msra.mxu0 0.0
    %436 = vmatpush.msra.mxu0 %v98
    %437 = vmatpush.msra.mxu0 %v96
    %438 = vmatpush.msra.mxu0 %v94
    %439 = vmatpush.msra.mxu0 %v92
    %440 = vmatmul.f32.gmra.mxu0 %v396
    %v441 = vpop.f32.mrf.mxu0
    %v442 = vadd.f32 0.0, %v441
    %443 = vmatmul.f32.gmra.mxu0 %v399
    %v444 = vpop.f32.mrf.mxu0
    %v445 = vadd.f32 0.0, %v444
    %446 = vdwg.mxu0
    %v447 = vperm.slane %v107, 0
    %v448 = vadd.f32 %v419, %v447
    %v449 = vadd.f32 %v422, %v447
    %vm450 = vcmask 130048
    %v452 = vsel %vm450, %v89, 0
    %v455 = vsel %vm450, %v90, 0
    %457 = vmatpush.msra.mxu0 0.0
    %458 = vmatpush.msra.mxu0 0.0
    %459 = vmatpush.msra.mxu0 0.0
    %460 = vmatpush.msra.mxu0 0.0
    %461 = vmatpush.msra.mxu0 0.0
    %462 = vmatpush.msra.mxu0 0.0
    %463 = vmatpush.msra.mxu0 0.0
    %464 = vmatpush.msra.mxu0 0.0
    %465 = vmatpush.msra.mxu0 0.0
    %466 = vmatpush.msra.mxu0 0.0
    %467 = vmatpush.msra.mxu0 0.0
    %468 = vmatpush.msra.mxu0 0.0
    %469 = vmatpush.msra.mxu0 0.0
    %470 = vmatpush.msra.mxu0 0.0
    %471 = vmatpush.msra.mxu0 %v445
    %472 = vmatpush.msra.mxu0 %v442
    %473 = vmatmul.f32.gmra.mxu0 %v452
    %v474 = vpop.f32.mrf.mxu0
    %v475 = vadd.f32 0.0, %v474
    %476 = vmatmul.f32.gmra.mxu0 %v455
    %v477 = vpop.f32.mrf.mxu0
    %v478 = vadd.f32 0.0, %v477
    %479 = vdwg.mxu0
    %v480 = vmul.f32 %v448, %v475
    %v481 = vmul.f32 %v449, %v478
    %v482 = vperm.slane %v108, 0
    %483 = vmatpush.msra.mxu0 %v393
    %484 = vmatpush.msra.mxu0 %v392
    %485 = vmatpush.msra.mxu0 %v391
    %486 = vmatpush.msra.mxu0 %v390
    %487 = vmatpush.msra.mxu0 %v389
    %488 = vmatpush.msra.mxu0 %v388
    %489 = vmatpush.msra.mxu0 %v387
    %490 = vmatpush.msra.mxu0 %v386
    %491 = vmatpush.msra.mxu0 %v385
    %492 = vmatpush.msra.mxu0 %v384
    %493 = vmatpush.msra.mxu0 %v383
    %494 = vmatpush.msra.mxu0 %v382
    %495 = vmatpush.msra.mxu0 %v381
    %496 = vmatpush.msra.mxu0 %v380
    %497 = vmatpush.msra.mxu0 %v379
    %498 = vmatpush.msra.mxu0 %v378
    %499 = vmatmul.f32.gmra.mxu0 %v480
    %v500 = vpop.f32.mrf.mxu0
    %v501 = vadd.f32 %v482, %v500
    %502 = vmatmul.f32.gmra.mxu0 %v481
    %v503 = vpop.f32.mrf.mxu0
    %v504 = vadd.f32 %v482, %v503
    %505 = vdwg.mxu0
    %vm506 = vcmp.gt.f32.partialorder %v501, 0.0
    %vm507 = vcmp.gt.f32.partialorder %v504, 0.0
    %v508 = vmul.f32 %v501, 0.01
    %v509 = vmul.f32 %v504, 0.01
    %v510 = vsel %vm506, %v501, %v508
    %v511 = vsel %vm507, %v504, %v509
    %v513 = vsel %vm394, %v510, 0
    %v516 = vsel %vm394, %v511, 0
    %518 = vmatpush.msra.mxu0 0.0
    %519 = vmatpush.msra.mxu0 0.0
    %520 = vmatpush.msra.mxu0 0.0
    %521 = vmatpush.msra.mxu0 0.0
    %522 = vmatpush.msra.mxu0 0.0
    %523 = vmatpush.msra.mxu0 0.0
    %524 = vmatpush.msra.mxu0 0.0
    %525 = vmatpush.msra.mxu0 0.0
    %526 = vmatpush.msra.mxu0 0.0
    %527 = vmatpush.msra.mxu0 0.0
    %528 = vmatpush.msra.mxu0 0.0
    %529 = vmatpush.msra.mxu0 0.0
    %530 = vmatpush.msra.mxu0 %v105
    %531 = vmatpush.msra.mxu0 %v103
    %532 = vmatpush.msra.mxu0 %v101
    %533 = vmatpush.msra.mxu0 %v99
    %534 = vmatmul.f32.gmra.mxu0 %v513
    %v535 = vpop.f32.mrf.mxu0
    %v536 = vadd.f32 0.0, %v535
    %537 = vmatmul.f32.gmra.mxu0 %v516
    %v538 = vpop.f32.mrf.mxu0
    %v539 = vadd.f32 0.0, %v538
    %540 = vdwg.mxu0
    %541 = vmatpush.msra.mxu0 0.0
    %542 = vmatpush.msra.mxu0 0.0
    %543 = vmatpush.msra.mxu0 0.0
    %544 = vmatpush.msra.mxu0 0.0
    %545 = vmatpush.msra.mxu0 0.0
    %546 = vmatpush.msra.mxu0 0.0
    %547 = vmatpush.msra.mxu0 0.0
    %548 = vmatpush.msra.mxu0 0.0
    %549 = vmatpush.msra.mxu0 0.0
    %550 = vmatpush.msra.mxu0 0.0
    %551 = vmatpush.msra.mxu0 0.0
    %552 = vmatpush.msra.mxu0 0.0
    %553 = vmatpush.msra.mxu0 %v106
    %554 = vmatpush.msra.mxu0 %v104
    %555 = vmatpush.msra.mxu0 %v102
    %556 = vmatpush.msra.mxu0 %v100
    %557 = vmatmul.f32.gmra.mxu0 %v513
    %v558 = vpop.f32.mrf.mxu0
    %v559 = vadd.f32 0.0, %v558
    %560 = vmatmul.f32.gmra.mxu0 %v516
    %v561 = vpop.f32.mrf.mxu0
    %v562 = vadd.f32 0.0, %v561
    %563 = vdwg.mxu0
    %v564 = vperm.slane %v107, 1
    %v565 = vadd.f32 %v536, %v564
    %v566 = vadd.f32 %v539, %v564
    %567 = vmatpush.msra.mxu0 0.0
    %568 = vmatpush.msra.mxu0 0.0
    %569 = vmatpush.msra.mxu0 0.0
    %570 = vmatpush.msra.mxu0 0.0
    %571 = vmatpush.msra.mxu0 0.0
    %572 = vmatpush.msra.mxu0 0.0
    %573 = vmatpush.msra.mxu0 0.0
    %574 = vmatpush.msra.mxu0 0.0
    %575 = vmatpush.msra.mxu0 0.0
    %576 = vmatpush.msra.mxu0 0.0
    %577 = vmatpush.msra.mxu0 0.0
    %578 = vmatpush.msra.mxu0 0.0
    %579 = vmatpush.msra.mxu0 0.0
    %580 = vmatpush.msra.mxu0 0.0
    %581 = vmatpush.msra.mxu0 %v562
    %582 = vmatpush.msra.mxu0 %v559
    %583 = vmatmul.f32.gmra.mxu0 %v452
    %v584 = vpop.f32.mrf.mxu0
    %v585 = vadd.f32 0.0, %v584
    %586 = vmatmul.f32.gmra.mxu0 %v455
    %v587 = vpop.f32.mrf.mxu0
    %v588 = vadd.f32 0.0, %v587
    %589 = vdwg.mxu0
    %v590 = vmul.f32 %v565, %v585
    %v591 = vmul.f32 %v566, %v588
    %v592 = vperm.slane %v108, 1
    %593 = vmatpush.msra.mxu0 %v393
    %594 = vmatpush.msra.mxu0 %v392
    %595 = vmatpush.msra.mxu0 %v391
    %596 = vmatpush.msra.mxu0 %v390
    %597 = vmatpush.msra.mxu0 %v389
    %598 = vmatpush.msra.mxu0 %v388
    %599 = vmatpush.msra.mxu0 %v387
    %600 = vmatpush.msra.mxu0 %v386
    %601 = vmatpush.msra.mxu0 %v385
    %602 = vmatpush.msra.mxu0 %v384
    %603 = vmatpush.msra.mxu0 %v383
    %604 = vmatpush.msra.mxu0 %v382
    %605 = vmatpush.msra.mxu0 %v381
    %606 = vmatpush.msra.mxu0 %v380
    %607 = vmatpush.msra.mxu0 %v379
    %608 = vmatpush.msra.mxu0 %v378
    %609 = vmatmul.f32.gmra.mxu0 %v590
    %v610 = vpop.f32.mrf.mxu0
    %v611 = vadd.f32 %v592, %v610
    %612 = vmatmul.f32.gmra.mxu0 %v591
    %v613 = vpop.f32.mrf.mxu0
    %v614 = vadd.f32 %v592, %v613
    %615 = vdwg.mxu0
    %vm616 = vcmp.gt.f32.partialorder %v611, 0.0
    %vm617 = vcmp.gt.f32.partialorder %v614, 0.0
    %v618 = vmul.f32 %v611, 0.01
    %v619 = vmul.f32 %v614, 0.01
    %v620 = vsel %vm616, %v611, %v618
    %v621 = vsel %vm617, %v614, %v619
    %v622 = vld [vmem:[%s2] sm:$0x3]
    %v623 = vld [vmem:[%s3] sm:$0x3]
    %625 = vset.pattern.permute.xlu0 0
    %626 = vperm.xlu0 %625, %v623
    %v627 = vpop.permute.xlu0 %626
    %v629 = vperm.slane %v121, 0
    %v630 = vmul.f32 %v627, %v629
    %v631 = vperm.slane %v121, 1
    %v632 = vadd.f32 %v630, %v631
    %v634 = vsel %vm450, %v622, 0
    %636 = vmatpush.msra.mxu0 0.0
    %637 = vmatpush.msra.mxu0 0.0
    %638 = vmatpush.msra.mxu0 0.0
    %639 = vmatpush.msra.mxu0 0.0
    %640 = vmatpush.msra.mxu0 0.0
    %641 = vmatpush.msra.mxu0 0.0
    %642 = vmatpush.msra.mxu0 0.0
    %643 = vmatpush.msra.mxu0 0.0
    %644 = vmatpush.msra.mxu0 0.0
    %645 = vmatpush.msra.mxu0 0.0
    %646 = vmatpush.msra.mxu0 0.0
    %647 = vmatpush.msra.mxu0 0.0
    %648 = vmatpush.msra.mxu0 0.0
    %649 = vmatpush.msra.mxu0 0.0
    %650 = vmatpush.msra.mxu0 %v88
    %651 = vmatpush.msra.mxu0 %v87
    %652 = vmatmul.f32.gmra.mxu0 %v634
    %v653 = vpop.f32.mrf.mxu0
    %v654 = vadd.f32 0.0, %v653
    %655 = vdwg.mxu0
    %v657 = vsel %vm394, %v654, 0
    %659 = vmatpush.msra.mxu0 0.0
    %660 = vmatpush.msra.mxu0 0.0
    %661 = vmatpush.msra.mxu0 0.0
    %662 = vmatpush.msra.mxu0 0.0
    %663 = vmatpush.msra.mxu0 0.0
    %664 = vmatpush.msra.mxu0 0.0
    %665 = vmatpush.msra.mxu0 0.0
    %666 = vmatpush.msra.mxu0 0.0
    %667 = vmatpush.msra.mxu0 0.0
    %668 = vmatpush.msra.mxu0 0.0
    %669 = vmatpush.msra.mxu0 0.0
    %670 = vmatpush.msra.mxu0 0.0
    %671 = vmatpush.msra.mxu0 %v112
    %672 = vmatpush.msra.mxu0 %v111
    %673 = vmatpush.msra.mxu0 %v110
    %674 = vmatpush.msra.mxu0 %v109
    %675 = vmatmul.f32.gmra.mxu0 %v657
    %v676 = vpop.f32.mrf.mxu0
    %v677 = vadd.f32 0.0, %v676
    %678 = vdwg.mxu0
    %v679 = vadd.f32 %v632, %v677
    %680 = vmatpush.msra.mxu0 0.0
    %681 = vmatpush.msra.mxu0 0.0
    %682 = vmatpush.msra.mxu0 0.0
    %683 = vmatpush.msra.mxu0 0.0
    %684 = vmatpush.msra.mxu0 0.0
    %685 = vmatpush.msra.mxu0 0.0
    %686 = vmatpush.msra.mxu0 0.0
    %687 = vmatpush.msra.mxu0 0.0
    %688 = vmatpush.msra.mxu0 0.0
    %689 = vmatpush.msra.mxu0 0.0
    %690 = vmatpush.msra.mxu0 0.0
    %691 = vmatpush.msra.mxu0 0.0
    %692 = vmatpush.msra.mxu0 0.0
    %693 = vmatpush.msra.mxu0 0.0
    %694 = vmatpush.msra.mxu0 %v511
    %695 = vmatpush.msra.mxu0 %v510
    %696 = vmatmul.f32.gmra.mxu0 %v634
    %v697 = vpop.f32.mrf.mxu0
    %v698 = vadd.f32 0.0, %v697
    %699 = vdwg.mxu0
    %v701 = vsel %vm394, %v698, 0
    %703 = vmatpush.msra.mxu0 0.0
    %704 = vmatpush.msra.mxu0 0.0
    %705 = vmatpush.msra.mxu0 0.0
    %706 = vmatpush.msra.mxu0 0.0
    %707 = vmatpush.msra.mxu0 0.0
    %708 = vmatpush.msra.mxu0 0.0
    %709 = vmatpush.msra.mxu0 0.0
    %710 = vmatpush.msra.mxu0 0.0
    %711 = vmatpush.msra.mxu0 0.0
    %712 = vmatpush.msra.mxu0 0.0
    %713 = vmatpush.msra.mxu0 0.0
    %714 = vmatpush.msra.mxu0 0.0
    %715 = vmatpush.msra.mxu0 %v116
    %716 = vmatpush.msra.mxu0 %v115
    %717 = vmatpush.msra.mxu0 %v114
    %718 = vmatpush.msra.mxu0 %v113
    %719 = vmatmul.f32.gmra.mxu0 %v701
    %v720 = vpop.f32.mrf.mxu0
    %v721 = vadd.f32 0.0, %v720
    %722 = vdwg.mxu0
    %v723 = vadd.f32 %v679, %v721
    %724 = vmatpush.msra.mxu0 0.0
    %725 = vmatpush.msra.mxu0 0.0
    %726 = vmatpush.msra.mxu0 0.0
    %727 = vmatpush.msra.mxu0 0.0
    %728 = vmatpush.msra.mxu0 0.0
    %729 = vmatpush.msra.mxu0 0.0
    %730 = vmatpush.msra.mxu0 0.0
    %731 = vmatpush.msra.mxu0 0.0
    %732 = vmatpush.msra.mxu0 0.0
    %733 = vmatpush.msra.mxu0 0.0
    %734 = vmatpush.msra.mxu0 0.0
    %735 = vmatpush.msra.mxu0 0.0
    %736 = vmatpush.msra.mxu0 0.0
    %737 = vmatpush.msra.mxu0 0.0
    %738 = vmatpush.msra.mxu0 %v621
    %739 = vmatpush.msra.mxu0 %v620
    %740 = vmatmul.f32.gmra.mxu0 %v634
    %v741 = vpop.f32.mrf.mxu0
    %v742 = vadd.f32 0.0, %v741
    %743 = vdwg.mxu0
    %v745 = vsel %vm394, %v742, 0
    %747 = vmatpush.msra.mxu0 0.0
    %748 = vmatpush.msra.mxu0 0.0
    %749 = vmatpush.msra.mxu0 0.0
    %750 = vmatpush.msra.mxu0 0.0
    %751 = vmatpush.msra.mxu0 0.0
    %752 = vmatpush.msra.mxu0 0.0
    %753 = vmatpush.msra.mxu0 0.0
    %754 = vmatpush.msra.mxu0 0.0
    %755 = vmatpush.msra.mxu0 0.0
    %756 = vmatpush.msra.mxu0 0.0
    %757 = vmatpush.msra.mxu0 0.0
    %758 = vmatpush.msra.mxu0 0.0
    %759 = vmatpush.msra.mxu0 %v120
    %760 = vmatpush.msra.mxu0 %v119
    %761 = vmatpush.msra.mxu0 %v118
    %762 = vmatpush.msra.mxu0 %v117
    %763 = vmatmul.f32.gmra.mxu0 %v745
    %v764 = vpop.f32.mrf.mxu0
    %v765 = vadd.f32 0.0, %v764
    %766 = vdwg.mxu0
    %v767 = vadd.f32 %v723, %v765
    %vm768 = vcmp.gt.f32.partialorder %v767, 0.0
    %v769 = vmul.f32 %v767, 0.01
    %v770 = vsel %vm768, %v767, %v769
    %v771 = vperm.slane %v121, 2
    %vm772 = vcmask 392192
    %v774 = vsel %vm772, %v770, 0
    %776 = vmatpush.msra.mxu0 0.0
    %777 = vmatpush.msra.mxu0 0.0
    %778 = vmatpush.msra.mxu0 0.0
    %779 = vmatpush.msra.mxu0 0.0
    %780 = vmatpush.msra.mxu0 0.0
    %781 = vmatpush.msra.mxu0 0.0
    %782 = vmatpush.msra.mxu0 0.0
    %783 = vmatpush.msra.mxu0 0.0
    %784 = vmatpush.msra.mxu0 0.0
    %785 = vmatpush.msra.mxu0 0.0
    %786 = vmatpush.msra.mxu0 %v127
    %787 = vmatpush.msra.mxu0 %v126
    %788 = vmatpush.msra.mxu0 %v125
    %789 = vmatpush.msra.mxu0 %v124
    %790 = vmatpush.msra.mxu0 %v123
    %791 = vmatpush.msra.mxu0 %v122
    %792 = vmatmul.f32.gmra.mxu0 %v774
    %v793 = vpop.f32.mrf.mxu0
    %v794 = vadd.f32 %v771, %v793
    %795 = vdwg.mxu0
    %vm796 = vcmp.gt.f32.partialorder %v794, 0.0
    %v797 = vmul.f32 %v794, 0.01
    %v798 = vsel %vm796, %v794, %v797
    %v799 = vperm.slane %v134, 0
    %v801 = vsel %vm772, %v798, 0
    %803 = vmatpush.msra.mxu0 0.0
    %804 = vmatpush.msra.mxu0 0.0
    %805 = vmatpush.msra.mxu0 0.0
    %806 = vmatpush.msra.mxu0 0.0
    %807 = vmatpush.msra.mxu0 0.0
    %808 = vmatpush.msra.mxu0 0.0
    %809 = vmatpush.msra.mxu0 0.0
    %810 = vmatpush.msra.mxu0 0.0
    %811 = vmatpush.msra.mxu0 0.0
    %812 = vmatpush.msra.mxu0 0.0
    %813 = vmatpush.msra.mxu0 %v133
    %814 = vmatpush.msra.mxu0 %v132
    %815 = vmatpush.msra.mxu0 %v131
    %816 = vmatpush.msra.mxu0 %v130
    %817 = vmatpush.msra.mxu0 %v129
    %818 = vmatpush.msra.mxu0 %v128
    %819 = vmatmul.f32.gmra.mxu0 %v801
    %v820 = vpop.f32.mrf.mxu0
    %v821 = vadd.f32 %v799, %v820
    %822 = vdwg.mxu0
    %vm823 = vcmask 25600
    %824 = vst.msk [vmem:[#allocation10] sm:$0x3] %vm823, %v821
    // Predicated region
    $region42: #{fwd.1} parent=1 // pred_check
      _
    $region43: #{fwd.1} parent=1 // pred_check_branch
      %826 = sbr.rel (0) target = $region45
    $region44: #{fwd.1} parent=1 // pred_region
      %828 = vsyncadd [#allocation4], 0
      %s830 = sshll.u32 [#allocation10], 4
      %s831 = int_to_ptr.vmem [resolvable:$true] %s830
      %s832 = sshll.u32 %s6, 4
      %s833 = int_to_ptr.hbm [resolvable:$true] %s832
      %835 = dma.vmem_to_hbm [thread:$0]  %s831, 32, %s833, [#allocation4]
    $region45: #{fwd.1} parent=1 // pred_fallthru
      _
    // Predicated region
    $region46: #{fwd.1} parent=1 // pred_check
      _
    $region47: #{fwd.1} parent=1 // pred_check_branch
      %837 = sbr.rel (0) target = $region49
    $region48: #{fwd.1} parent=1 // pred_region
      %839 = dma.done [#allocation4], 32
    $region49: #{fwd.1} parent=1 // pred_fallthru
      _
    %840 = vsyncpa [#allocation3], 1
    %841 = vsyncpa [#allocation6], 1
    %842 = vsyncpa [#allocation9], 1
    %843 = vsyncpa [#allocation4], 1

</llo_original>
